<compile_context>
chip_gen: v6e
topology: v6e:2x2x1
jax: 0.10.0
libtpu: 0.0.40
codegen_flags: <defaults>
</compile_context>

<pallas_src>
import functools

import jax
import jax.numpy as jnp
from jax import lax
from jax.experimental import pallas as pl
from jax.experimental.pallas import tpu as pltpu


def _lookahead_kernel(w_ref, x_ref, halo_ref, o_ref, xc_ref, *, context, tt, h):
    """One time-tile of the depthwise lookahead convolution.

    w_ref:    (C, 1, BF)   per-tap weights, broadcast-ready along lanes (VMEM-resident).
    x_ref:    (TT, BF)     rows [i*TT, (i+1)*TT) of the zero-padded input.
    halo_ref: (H,  BF)     rows [(i+1)*TT, (i+1)*TT + H), with H >= context - 1.
    o_ref:    (TT, BF)     output rows [i*TT, (i+1)*TT).
    xc_ref:   (TT+H, BF)   VMEM scratch holding the contiguous [tile ; halo] window.
    """
    # Assemble the contiguous time window in VMEM (both stores are sublane-aligned: TT, H % 8 == 0).
    xc_ref[0:tt, :] = x_ref[...]
    xc_ref[tt:tt + h, :] = halo_ref[...]
    xc = xc_ref[...]                                   # (TT + H, BF)

    # Tap 0 needs no shift.
    acc = x_ref[...] * w_ref[0]                        # (TT, BF) * (1, BF)
    # Taps 1..C-1: shifted[r] = xc[r + k].  The rotate runs on the XLU (separate issue slot),
    # the FMA on the VPU; the [0:TT] slice is offset-0 / aligned.
    for k in range(1, context):
        shifted = pltpu.roll(xc, shift=tt + h - k, axis=0)[0:tt]
        acc = acc + shifted * w_ref[k]
    o_ref[...] = acc.astype(o_ref.dtype)


def lookahead_forward(x, weight, *, tt_target=128):
    """Pallas Lookahead.forward.

    x:      (seq_len, n_batch, n_features) float32
    weight: (n_features, 1, context) — PyTorch nn.Conv1d(groups=n_features, bias=False) weight
    returns (seq_len, n_batch, n_features)
    """
    T, B, F = x.shape
    C = weight.shape[-1]
    BF = B * F

    # (F, 1, C) -> (C, F) -> tiled across batch -> (C, 1, B*F) broadcast table.
    # The flattened lane index is b*F + f, so tiling the length-F weight row B times matches it.
    w_cf = jnp.transpose(weight[:, 0, :], (1, 0))            # (C, F)
    w_tab = jnp.tile(w_cf, (1, B)).reshape(C, 1, BF)         # (C, 1, B*F)

    # Time tiling: halo H = smallest multiple of 8 covering context-1; tile TT = a multiple of H
    # (hence of 8) near tt_target, capped at the rounded-up sequence length.
    h = max(8, ((C - 1 + 7) // 8) * 8)
    tt = max(h, (tt_target // h) * h)
    tt = min(tt, max(h, ((T + h - 1) // h) * h))
    n_tiles = (T + tt - 1) // tt
    t_pad = n_tiles * tt + h            # trailing zeros cover both the lookahead pad and the ragged tile

    x2 = jnp.pad(x.reshape(T, BF), ((0, t_pad - T), (0, 0)))
    halo_stride = tt // h

    kernel = functools.partial(_lookahead_kernel, context=C, tt=tt, h=h)

    itemsize = x.dtype.itemsize
    cost = pl.CostEstimate(
        flops=2 * C * n_tiles * tt * BF,
        transcendentals=0,
        bytes_accessed=itemsize * (t_pad * BF + n_tiles * h * BF + C * BF + n_tiles * tt * BF),
    )

    out = pl.pallas_call(
        kernel,
        out_shape=jax.ShapeDtypeStruct((n_tiles * tt, BF), x.dtype),
        grid_spec=pltpu.PrefetchScalarGridSpec(
            num_scalar_prefetch=0,
            grid=(n_tiles,),
            in_specs=[
                pl.BlockSpec((C, 1, BF), lambda i: (0, 0, 0)),                 # weights (resident)
                pl.BlockSpec((tt, BF), lambda i: (i, 0)),                      # main time tile
                pl.BlockSpec((h, BF), lambda i: ((i + 1) * halo_stride, 0)),   # halo: next H rows
            ],
            out_specs=pl.BlockSpec((tt, BF), lambda i: (i, 0)),
            scratch_shapes=[pltpu.VMEM((tt + h, BF), x.dtype)],
        ),
        compiler_params=pltpu.CompilerParams(dimension_semantics=("parallel",)),
        cost_estimate=cost,
    )(w_tab, x2, x2)

    return out[:T].reshape(T, B, F)


def ref_forward(x, weight):
    """Pure-JAX reference replicating the PyTorch Lookahead module exactly."""
    T, B, F = x.shape
    C = weight.shape[-1]
    xt = jnp.transpose(x, (1, 2, 0))                         # x.transpose(0,1).transpose(1,2) -> (B, F, T)
    xt = jnp.pad(xt, ((0, 0), (0, 0), (0, C - 1)))           # F.pad(x, (0, context-1))
    y = lax.conv_general_dilated(
        xt, weight, window_strides=(1,), padding="VALID",
        dimension_numbers=("NCH", "OIH", "NCH"),
        feature_group_count=F)                               # depthwise Conv1d, bias=False
    return jnp.transpose(y, (2, 0, 1))                       # back to (T, B, F)


if __name__ == "__main__":
    key = jax.random.PRNGKey(0)
    kx, kw = jax.random.split(key)

    # (seq_len, n_batch, n_features); n_features a multiple of 128 keeps stores lane-dense.
    T, B, F, context = 100, 2, 256, 11
    x = jax.random.normal(kx, (T, B, F), jnp.float32)
    weight = 0.1 * jax.random.normal(kw, (F, 1, context), jnp.float32)   # PyTorch Conv1d layout

    out = lookahead_forward(x, weight, tt_target=32)   # 4 time tiles -> pipelined, megacore-shardable
    out = jax.block_until_ready(out)

    ref = ref_forward(x, weight)
    assert out.shape == ref.shape, (out.shape, ref.shape)
    err = float(jnp.max(jnp.abs(out - ref)))
    assert err < 1e-4, err
    print("KERNEL_OK")
</pallas_src>

<mosaic_0001>
module attributes {stable_mosaic.version = 11 : i64} {
  func.func @_lookahead_kernel(%arg0: i32, %arg1: memref<11x1x512xf32, #tpu.memory_space<vmem>>, %arg2: memref<32x512xf32, #tpu.memory_space<vmem>>, %arg3: memref<16x512xf32, #tpu.memory_space<vmem>>, %arg4: memref<32x512xf32, #tpu.memory_space<vmem>>, %arg5: memref<48x512xf32, #tpu.memory_space<vmem>>) attributes {dimension_semantics = [#tpu.dimension_semantics<parallel>], iteration_bounds = array<i64: 4>, scalar_prefetch = 0 : i64, scratch_operands = 1 : i64, tpu.core_type = #tpu.core_type<tc>, window_params = [{pipeline_mode = #tpu.pipeline_mode<synchronous>, transform_indices = @transform_0, window_bounds = array<i64: 11, 1, 512>}, {transform_indices = @transform_1, window_bounds = array<i64: 32, 512>}, {transform_indices = @transform_2, window_bounds = array<i64: 16, 512>}, {transform_indices = @transform_3, window_bounds = array<i64: 32, 512>}]} {
    %c0 = arith.constant 0 : index
    %c0_0 = arith.constant 0 : index
    %0 = vector.load %arg2[%c0, %c0_0] : memref<32x512xf32, #tpu.memory_space<vmem>>, vector<32x512xf32>
    %c0_1 = arith.constant 0 : index
    %c0_2 = arith.constant 0 : index
    %1 = vector.load %arg5[%c0_1, %c0_2] : memref<48x512xf32, #tpu.memory_space<vmem>>, vector<32x512xf32>
    tpu.vector_store %arg5[%c0_1, %c0_2], %0 {strides = array<i32>} : memref<48x512xf32, #tpu.memory_space<vmem>>, vector<32x512xf32>,
    %c0_3 = arith.constant 0 : index
    %c0_4 = arith.constant 0 : index
    %2 = vector.load %arg3[%c0_3, %c0_4] : memref<16x512xf32, #tpu.memory_space<vmem>>, vector<16x512xf32>
    %c32 = arith.constant 32 : index
    %c0_5 = arith.constant 0 : index
    %3 = vector.load %arg5[%c32, %c0_5] : memref<48x512xf32, #tpu.memory_space<vmem>>, vector<16x512xf32>
    tpu.vector_store %arg5[%c32, %c0_5], %2 {strides = array<i32>} : memref<48x512xf32, #tpu.memory_space<vmem>>, vector<16x512xf32>,
    %c0_6 = arith.constant 0 : index
    %c0_7 = arith.constant 0 : index
    %4 = vector.load %arg5[%c0_6, %c0_7] : memref<48x512xf32, #tpu.memory_space<vmem>>, vector<48x512xf32>
    %c0_8 = arith.constant 0 : index
    %c0_9 = arith.constant 0 : index
    %5 = vector.load %arg2[%c0_8, %c0_9] : memref<32x512xf32, #tpu.memory_space<vmem>>, vector<32x512xf32>
    %c0_10 = arith.constant 0 : index
    %c0_11 = arith.constant 0 : index
    %c0_12 = arith.constant 0 : index
    %6 = vector.load %arg1[%c0_10, %c0_11, %c0_12] : memref<11x1x512xf32, #tpu.memory_space<vmem>>, vector<1x1x512xf32>
    %7 = vector.shape_cast %6 : vector<1x1x512xf32> to vector<1x512xf32>
    %8 = vector.broadcast %7 : vector<1x512xf32> to vector<32x512xf32>
    %9 = arith.mulf %5, %8 : vector<32x512xf32>
    %c47_i32 = arith.constant 47 : i32
    %10 = tpu.dynamic_rotate %4 by %c47_i32 dim 0 : vector<48x512xf32>, i32 -> vector<48x512xf32>
    %11 = vector.extract_strided_slice %10 {offsets = [0, 0], sizes = [32, 512], strides = [1, 1]} : vector<48x512xf32> to vector<32x512xf32>
    %c1 = arith.constant 1 : index
    %c0_13 = arith.constant 0 : index
    %c0_14 = arith.constant 0 : index
    %12 = vector.load %arg1[%c1, %c0_13, %c0_14] : memref<11x1x512xf32, #tpu.memory_space<vmem>>, vector<1x1x512xf32>
    %13 = vector.shape_cast %12 : vector<1x1x512xf32> to vector<1x512xf32>
    %14 = vector.broadcast %13 : vector<1x512xf32> to vector<32x512xf32>
    %15 = arith.mulf %11, %14 : vector<32x512xf32>
    %16 = arith.addf %9, %15 : vector<32x512xf32>
    %c46_i32 = arith.constant 46 : i32
    %17 = tpu.dynamic_rotate %4 by %c46_i32 dim 0 : vector<48x512xf32>, i32 -> vector<48x512xf32>
    %18 = vector.extract_strided_slice %17 {offsets = [0, 0], sizes = [32, 512], strides = [1, 1]} : vector<48x512xf32> to vector<32x512xf32>
    %c2 = arith.constant 2 : index
    %c0_15 = arith.constant 0 : index
    %c0_16 = arith.constant 0 : index
    %19 = vector.load %arg1[%c2, %c0_15, %c0_16] : memref<11x1x512xf32, #tpu.memory_space<vmem>>, vector<1x1x512xf32>
    %20 = vector.shape_cast %19 : vector<1x1x512xf32> to vector<1x512xf32>
    %21 = vector.broadcast %20 : vector<1x512xf32> to vector<32x512xf32>
    %22 = arith.mulf %18, %21 : vector<32x512xf32>
    %23 = arith.addf %16, %22 : vector<32x512xf32>
    %c45_i32 = arith.constant 45 : i32
    %24 = tpu.dynamic_rotate %4 by %c45_i32 dim 0 : vector<48x512xf32>, i32 -> vector<48x512xf32>
    %25 = vector.extract_strided_slice %24 {offsets = [0, 0], sizes = [32, 512], strides = [1, 1]} : vector<48x512xf32> to vector<32x512xf32>
    %c3 = arith.constant 3 : index
    %c0_17 = arith.constant 0 : index
    %c0_18 = arith.constant 0 : index
    %26 = vector.load %arg1[%c3, %c0_17, %c0_18] : memref<11x1x512xf32, #tpu.memory_space<vmem>>, vector<1x1x512xf32>
    %27 = vector.shape_cast %26 : vector<1x1x512xf32> to vector<1x512xf32>
    %28 = vector.broadcast %27 : vector<1x512xf32> to vector<32x512xf32>
    %29 = arith.mulf %25, %28 : vector<32x512xf32>
    %30 = arith.addf %23, %29 : vector<32x512xf32>
    %c44_i32 = arith.constant 44 : i32
    %31 = tpu.dynamic_rotate %4 by %c44_i32 dim 0 : vector<48x512xf32>, i32 -> vector<48x512xf32>
    %32 = vector.extract_strided_slice %31 {offsets = [0, 0], sizes = [32, 512], strides = [1, 1]} : vector<48x512xf32> to vector<32x512xf32>
    %c4 = arith.constant 4 : index
    %c0_19 = arith.constant 0 : index
    %c0_20 = arith.constant 0 : index
    %33 = vector.load %arg1[%c4, %c0_19, %c0_20] : memref<11x1x512xf32, #tpu.memory_space<vmem>>, vector<1x1x512xf32>
    %34 = vector.shape_cast %33 : vector<1x1x512xf32> to vector<1x512xf32>
    %35 = vector.broadcast %34 : vector<1x512xf32> to vector<32x512xf32>
    %36 = arith.mulf %32, %35 : vector<32x512xf32>
    %37 = arith.addf %30, %36 : vector<32x512xf32>
    %c43_i32 = arith.constant 43 : i32
    %38 = tpu.dynamic_rotate %4 by %c43_i32 dim 0 : vector<48x512xf32>, i32 -> vector<48x512xf32>
    %39 = vector.extract_strided_slice %38 {offsets = [0, 0], sizes = [32, 512], strides = [1, 1]} : vector<48x512xf32> to vector<32x512xf32>
    %c5 = arith.constant 5 : index
    %c0_21 = arith.constant 0 : index
    %c0_22 = arith.constant 0 : index
    %40 = vector.load %arg1[%c5, %c0_21, %c0_22] : memref<11x1x512xf32, #tpu.memory_space<vmem>>, vector<1x1x512xf32>
    %41 = vector.shape_cast %40 : vector<1x1x512xf32> to vector<1x512xf32>
    %42 = vector.broadcast %41 : vector<1x512xf32> to vector<32x512xf32>
    %43 = arith.mulf %39, %42 : vector<32x512xf32>
    %44 = arith.addf %37, %43 : vector<32x512xf32>
    %c42_i32 = arith.constant 42 : i32
    %45 = tpu.dynamic_rotate %4 by %c42_i32 dim 0 : vector<48x512xf32>, i32 -> vector<48x512xf32>
    %46 = vector.extract_strided_slice %45 {offsets = [0, 0], sizes = [32, 512], strides = [1, 1]} : vector<48x512xf32> to vector<32x512xf32>
    %c6 = arith.constant 6 : index
    %c0_23 = arith.constant 0 : index
    %c0_24 = arith.constant 0 : index
    %47 = vector.load %arg1[%c6, %c0_23, %c0_24] : memref<11x1x512xf32, #tpu.memory_space<vmem>>, vector<1x1x512xf32>
    %48 = vector.shape_cast %47 : vector<1x1x512xf32> to vector<1x512xf32>
    %49 = vector.broadcast %48 : vector<1x512xf32> to vector<32x512xf32>
    %50 = arith.mulf %46, %49 : vector<32x512xf32>
    %51 = arith.addf %44, %50 : vector<32x512xf32>
    %c41_i32 = arith.constant 41 : i32
    %52 = tpu.dynamic_rotate %4 by %c41_i32 dim 0 : vector<48x512xf32>, i32 -> vector<48x512xf32>
    %53 = vector.extract_strided_slice %52 {offsets = [0, 0], sizes = [32, 512], strides = [1, 1]} : vector<48x512xf32> to vector<32x512xf32>
    %c7 = arith.constant 7 : index
    %c0_25 = arith.constant 0 : index
    %c0_26 = arith.constant 0 : index
    %54 = vector.load %arg1[%c7, %c0_25, %c0_26] : memref<11x1x512xf32, #tpu.memory_space<vmem>>, vector<1x1x512xf32>
    %55 = vector.shape_cast %54 : vector<1x1x512xf32> to vector<1x512xf32>
    %56 = vector.broadcast %55 : vector<1x512xf32> to vector<32x512xf32>
    %57 = arith.mulf %53, %56 : vector<32x512xf32>
    %58 = arith.addf %51, %57 : vector<32x512xf32>
    %c40_i32 = arith.constant 40 : i32
    %59 = tpu.dynamic_rotate %4 by %c40_i32 dim 0 : vector<48x512xf32>, i32 -> vector<48x512xf32>
    %60 = vector.extract_strided_slice %59 {offsets = [0, 0], sizes = [32, 512], strides = [1, 1]} : vector<48x512xf32> to vector<32x512xf32>
    %c8 = arith.constant 8 : index
    %c0_27 = arith.constant 0 : index
    %c0_28 = arith.constant 0 : index
    %61 = vector.load %arg1[%c8, %c0_27, %c0_28] : memref<11x1x512xf32, #tpu.memory_space<vmem>>, vector<1x1x512xf32>
    %62 = vector.shape_cast %61 : vector<1x1x512xf32> to vector<1x512xf32>
    %63 = vector.broadcast %62 : vector<1x512xf32> to vector<32x512xf32>
    %64 = arith.mulf %60, %63 : vector<32x512xf32>
    %65 = arith.addf %58, %64 : vector<32x512xf32>
    %c39_i32 = arith.constant 39 : i32
    %66 = tpu.dynamic_rotate %4 by %c39_i32 dim 0 : vector<48x512xf32>, i32 -> vector<48x512xf32>
    %67 = vector.extract_strided_slice %66 {offsets = [0, 0], sizes = [32, 512], strides = [1, 1]} : vector<48x512xf32> to vector<32x512xf32>
    %c9 = arith.constant 9 : index
    %c0_29 = arith.constant 0 : index
    %c0_30 = arith.constant 0 : index
    %68 = vector.load %arg1[%c9, %c0_29, %c0_30] : memref<11x1x512xf32, #tpu.memory_space<vmem>>, vector<1x1x512xf32>
    %69 = vector.shape_cast %68 : vector<1x1x512xf32> to vector<1x512xf32>
    %70 = vector.broadcast %69 : vector<1x512xf32> to vector<32x512xf32>
    %71 = arith.mulf %67, %70 : vector<32x512xf32>
    %72 = arith.addf %65, %71 : vector<32x512xf32>
    %c38_i32 = arith.constant 38 : i32
    %73 = tpu.dynamic_rotate %4 by %c38_i32 dim 0 : vector<48x512xf32>, i32 -> vector<48x512xf32>
    %74 = vector.extract_strided_slice %73 {offsets = [0, 0], sizes = [32, 512], strides = [1, 1]} : vector<48x512xf32> to vector<32x512xf32>
    %c10 = arith.constant 10 : index
    %c0_31 = arith.constant 0 : index
    %c0_32 = arith.constant 0 : index
    %75 = vector.load %arg1[%c10, %c0_31, %c0_32] : memref<11x1x512xf32, #tpu.memory_space<vmem>>, vector<1x1x512xf32>
    %76 = vector.shape_cast %75 : vector<1x1x512xf32> to vector<1x512xf32>
    %77 = vector.broadcast %76 : vector<1x512xf32> to vector<32x512xf32>
    %78 = arith.mulf %74, %77 : vector<32x512xf32>
    %79 = arith.addf %72, %78 : vector<32x512xf32>
    %c0_33 = arith.constant 0 : index
    %c0_34 = arith.constant 0 : index
    %80 = vector.load %arg4[%c0_33, %c0_34] : memref<32x512xf32, #tpu.memory_space<vmem>>, vector<32x512xf32>
    tpu.vector_store %arg4[%c0_33, %c0_34], %79 {strides = array<i32>} : memref<32x512xf32, #tpu.memory_space<vmem>>, vector<32x512xf32>,
    return
  }
  func.func @transform_0(%arg0: i32) -> (i32, i32, i32) {
    %c0_i32 = arith.constant 0 : i32
    %c0_i32_0 = arith.constant 0 : i32
    %c0_i32_1 = arith.constant 0 : i32
    %c0_i32_2 = arith.constant 0 : i32
    return %c0_i32, %c0_i32_0, %c0_i32_1 : i32, i32, i32
  }
  func.func @transform_1(%arg0: i32) -> (i32, i32) {
    %c0_i32 = arith.constant 0 : i32
    %c0_i32_0 = arith.constant 0 : i32
    return %arg0, %c0_i32 : i32, i32
  }
  func.func @transform_2(%arg0: i32) -> (i32, i32) {
    %c1_i32 = arith.constant 1 : i32
    %0 = arith.addi %arg0, %c1_i32 : i32
    %c2_i32 = arith.constant 2 : i32
    %1 = arith.muli %0, %c2_i32 : i32
    %c0_i32 = arith.constant 0 : i32
    %c0_i32_0 = arith.constant 0 : i32
    return %1, %c0_i32 : i32, i32
  }
  func.func @transform_3(%arg0: i32) -> (i32, i32) {
    %c0_i32 = arith.constant 0 : i32
    %c0_i32_0 = arith.constant 0 : i32
    return %arg0, %c0_i32 : i32, i32
  }
}

</mosaic_0001>

<llo_original>
// kernel: tpu_custom_call.1
$region0: #{tpu_custom_call.1}
  #allocation0 [shape = 'u32[]', space=smem, size = 0x4, offset = 0x4, fixed_abs, tag = 'smem constant byte address 0x4 - core index']
  #allocation1 [shape = 'u32[144,128]{1,0:T(1,128)}', space=vmem, size = 0x12000, scoped, tag = 'internal scratch']
  #allocation2 [shape = 'f32[48,512]{1,0:T(8,128)}', space=vmem, size = 0x18000, scoped, tag = 'scratch operand']
  %s0 = inlined_call_operand.hbm [shape: f32[11,1,512], index: 0, kind: input, shape index: {}]
  %s1 = inlined_call_operand.hbm [shape: f32[144,512], index: 1, kind: input, shape index: {}]
  %s2 = inlined_call_operand.hbm [shape: f32[144,512], index: 2, kind: input, shape index: {}]
  %s3 = inlined_call_operand.hbm [shape: f32[128,512], index: 3, kind: output, shape index: {}]
  %s4 = sld [smem:[#allocation0]]
  $region57: #{tpu_custom_call.1} parent=0
    _
  %s6 = ssub.s32 1, %s4
  %s7 = scalar_select 0, %s6, %s4
  $region1: #{tpu_custom_call.1} parent=0
    #allocation3 [shape = 'u8[22528]{0}', space=vmem, size = 0x5800, scoped, tag = 'input window, operand 0, single buffered']
    #allocation4 [shape = 's32[2]{0}', space=sflag, size = 0x8, scoped, tag = 'scoped memory for tpu_custom_call.1']
    #allocation5 [shape = 's32[2]{0}', space=sflag, size = 0x8, scoped, tag = 'scoped memory for tpu_custom_call.1']
    #allocation6 [shape = 'u8[131072]{0}', space=vmem, size = 0x20000, scoped, tag = 'input window, operand 1']
    #allocation7 [shape = 's32[2]{0}', space=sflag, size = 0x8, scoped, tag = 'scoped memory for tpu_custom_call.1']
    #allocation8 [shape = 'u8[65536]{0}', space=vmem, size = 0x10000, scoped, tag = 'input window, operand 2']
    #allocation9 [shape = 'u8[131072]{0}', space=vmem, size = 0x20000, scoped, tag = 'output window, operand 0']
    %8 = vsyncpa [#allocation4], 0
    %9 = vsyncpa [#allocation7], 0
    %s10 = scalar_lea.sflag [#allocation7], 1
    %11 = vsyncpa %s10, 0
    %12 = vsyncpa [#allocation5], 0
    %s13 = scalar_lea.sflag [#allocation5], 1
    %14 = vsyncpa %s13, 0
    loop: start=0, step=1, limit=6
    $region2: #{tpu_custom_call.1} parent=1 // loop_pre_header
      _
    $region3: #{tpu_custom_call.1} parent=1 // loop_header
      %s16 = sphi 0, %s20
      %p17 = scmp.ge.s32.totalorder %s16, 6
      %s24 = sphi 0, %s24
      %s26 = sphi 0, %s24
      %s27 = sphi 0, %s26
      %s41 = sphi 0, %s27
      %s47 = sphi 0, %s49
      %s50 = sphi 0, %s47
      %s51 = sphi 0, %s50
      %s67 = sphi 0, %s51
      %s77 = sphi 0, %s79
      %s80 = sphi 0, %s77
      %s81 = sphi 0, %s80
      %s97 = sphi 0, %s81
      %s103 = sphi 0, %s105
      %s106 = sphi 0, %s103
      %s107 = sphi 0, %s106
      %s123 = sphi 0, %s107
    $region4: #{tpu_custom_call.1} parent=1 // loop_header_branch
      %19 = sbr.rel (%p17) target = $region8
    $region5: #{tpu_custom_call.1} parent=1 // loop_body
      %s21 = ssub.s32 %s16, 1
      %s22 = ssub.s32 %s16, 2
      %s23 = sadd.s32 %s16, 1
      %s25 = sadd.s32 %s24, 1
      %p28 = scmp.eq.s32.totalorder %s16, 3
      %p29 = scmp.ne.s32.totalorder %s24, %s26
      %p30 = scmp.eq.s32.totalorder %s16, 0
      %p31 = por %p29, %p30
      %p32 = scmp.ne.s32.totalorder %s24, %s26
      %p33 = scmp.eq.s32.totalorder %s21, 3
      %p34 = por %p32, %p33
      %p35 = scmp.ne.s32.totalorder %s26, %s27
      %p36 = scmp.eq.s32.totalorder %s21, 0
      %p37 = por %p35, %p36
      %p38 = scmp.ne.s32.totalorder %s26, %s27
      %p39 = scmp.eq.s32.totalorder %s22, 3
      %p40 = por %p38, %p39
      %p42 = scmp.ne.s32.totalorder %s27, %s41
      %p43 = scmp.eq.s32.totalorder %s22, 0
      %p44 = por %p42, %p43
      %s45 = ssub.s32 %s16, %s23
      %p46 = scmp.eq.s32.totalorder %s45, 0
      %s48 = sadd.s32 %s47, 1
      %s49 = scalar_select %p46, %s47, %s48
      %p52 = pneg %p46
      %p53 = scmp.eq.s32.totalorder %s16, 3
      %p54 = por %p52, %p53
      %p55 = scmp.ne.s32.totalorder %s47, %s50
      %p56 = scmp.eq.s32.totalorder %s16, 0
      %p57 = por %p55, %p56
      %p58 = scmp.ne.s32.totalorder %s47, %s50
      %p59 = scmp.eq.s32.totalorder %s21, 3
      %p60 = por %p58, %p59
      %p61 = scmp.ne.s32.totalorder %s50, %s51
      %p62 = scmp.eq.s32.totalorder %s21, 0
      %p63 = por %p61, %p62
      %p64 = scmp.ne.s32.totalorder %s50, %s51
      %p65 = scmp.eq.s32.totalorder %s22, 3
      %p66 = por %p64, %p65
      %p68 = scmp.ne.s32.totalorder %s51, %s67
      %p69 = scmp.eq.s32.totalorder %s22, 0
      %p70 = por %p68, %p69
      %s71 = sadd.s32 %s16, 1
      %s72 = smul.u32 %s71, 2
      %s73 = sadd.s32 %s23, 1
      %s74 = smul.u32 %s73, 2
      %s75 = ssub.s32 %s72, %s74
      %p76 = scmp.eq.s32.totalorder %s75, 0
      %s78 = sadd.s32 %s77, 1
      %s79 = scalar_select %p76, %s77, %s78
      %p82 = pneg %p76
      %p83 = scmp.eq.s32.totalorder %s16, 3
      %p84 = por %p82, %p83
      %p85 = scmp.ne.s32.totalorder %s77, %s80
      %p86 = scmp.eq.s32.totalorder %s16, 0
      %p87 = por %p85, %p86
      %p88 = scmp.ne.s32.totalorder %s77, %s80
      %p89 = scmp.eq.s32.totalorder %s21, 3
      %p90 = por %p88, %p89
      %p91 = scmp.ne.s32.totalorder %s80, %s81
      %p92 = scmp.eq.s32.totalorder %s21, 0
      %p93 = por %p91, %p92
      %p94 = scmp.ne.s32.totalorder %s80, %s81
      %p95 = scmp.eq.s32.totalorder %s22, 3
      %p96 = por %p94, %p95
      %p98 = scmp.ne.s32.totalorder %s81, %s97
      %p99 = scmp.eq.s32.totalorder %s22, 0
      %p100 = por %p98, %p99
      %s101 = ssub.s32 %s16, %s23
      %p102 = scmp.eq.s32.totalorder %s101, 0
      %s104 = sadd.s32 %s103, 1
      %s105 = scalar_select %p102, %s103, %s104
      %p108 = pneg %p102
      %p109 = scmp.eq.s32.totalorder %s16, 3
      %p110 = por %p108, %p109
      %p111 = scmp.ne.s32.totalorder %s103, %s106
      %p112 = scmp.eq.s32.totalorder %s16, 0
      %p113 = por %p111, %p112
      %p114 = scmp.ne.s32.totalorder %s103, %s106
      %p115 = scmp.eq.s32.totalorder %s21, 3
      %p116 = por %p114, %p115
      %p117 = scmp.ne.s32.totalorder %s106, %s107
      %p118 = scmp.eq.s32.totalorder %s21, 0
      %p119 = por %p117, %p118
      %p120 = scmp.ne.s32.totalorder %s106, %s107
      %p121 = scmp.eq.s32.totalorder %s22, 3
      %p122 = por %p120, %p121
      %p124 = scmp.ne.s32.totalorder %s107, %s123
      %p125 = scmp.eq.s32.totalorder %s22, 0
      %p126 = por %p124, %p125
      %p127 = scmp.le.s32.totalorder 1, %s16
      %p128 = scmp.lt.s32.totalorder %s16, 5
      %p129 = pnand %p127, %p128
      %p130 = pneg %p129
      // Predicated region
      $region9: #{tpu_custom_call.1} parent=5 // pred_check
        _
      $region10: #{tpu_custom_call.1} parent=5 // pred_check_branch
        %132 = sbr.rel (%p129) target = $region12
      $region11: #{tpu_custom_call.1} parent=5 // pred_region
        %s133 = ssub.s32 %s16, 1
        // Predicated region
        $region13: #{tpu_custom_call.1} parent=11 // pred_check
          %p134 = pneg %p37
        $region14: #{tpu_custom_call.1} parent=11 // pred_check_branch
          %136 = sbr.rel (%p134) target = $region16
        $region15: #{tpu_custom_call.1} parent=11 // pred_region
          %s138 = ssub.s32 704, 704
          %139 = vsyncadd [#allocation4], %s138
          %s140 = sshll.u32 [#allocation3], 4
          %s141 = int_to_ptr.vmem [resolvable:$true] %s140
          %146 = dma.hbm_to_vmem [thread:$0]  %s0, 704, %s141, [#allocation4], 64, 64, 4
        $region16: #{tpu_custom_call.1} parent=11 // pred_fallthru
          _
      $region12: #{tpu_custom_call.1} parent=5 // pred_fallthru
        _
      %p147 = scmp.lt.s32.totalorder %s16, 4
      // Predicated region
      $region17: #{tpu_custom_call.1} parent=5 // pred_check
        %p148 = pneg %p147
      $region18: #{tpu_custom_call.1} parent=5 // pred_check_branch
        %150 = sbr.rel (%p148) target = $region20
      $region19: #{tpu_custom_call.1} parent=5 // pred_region
        // Predicated region
        $region21: #{tpu_custom_call.1} parent=19 // pred_check
          %p151 = pneg %p57
        $region22: #{tpu_custom_call.1} parent=19 // pred_check_branch
          %153 = sbr.rel (%p151) target = $region24
        $region23: #{tpu_custom_call.1} parent=19 // pred_region
          %s154 = sand.u32 %s16, 1
          %s155 = scalar_lea.sflag [#allocation7], %s154
          %s156 = sand.u32 %s47, 1
          %s157 = smul.addr %s156, 128
          %s158 = scalar_lea.vmem [#allocation6], %s157
          %s159 = smul.u32 4, %s16
          %s160 = ssub.s32 18, %s159
          %p161 = scmp.lt.s32.totalorder %s160, 4
          %s162 = scalar_select %p161, %s160, 4
          %s163 = smul.u32 128, %s162
          %s164 = smul.u32 %s163, 4
          %s166 = ssub.s32 2048, %s164
          %167 = vsyncadd %s155, %s166
          %p168 = scmp.ne.s32.totalorder 0, %s164
          %s169 = smul.addr %s159, 4
          %s170 = smul.addr %s169, 128
          %s171 = scalar_lea.hbm %s1, %s170
          %s172 = smul.u32 32, %s162
          %s173 = sshll.u32 %s158, 4
          %s174 = int_to_ptr.vmem [resolvable:$true] %s173
          %s175 = sshll.u32 %s172, 4
          %179 = dma.hbm_to_vmem [thread:$0]  (%p168), %s171, %s175, %s174, %s155, 512, 512, 32
        $region24: #{tpu_custom_call.1} parent=19 // pred_fallthru
          _
        // Predicated region
        $region25: #{tpu_custom_call.1} parent=19 // pred_check
          %p180 = pneg %p87
        $region26: #{tpu_custom_call.1} parent=19 // pred_check_branch
          %182 = sbr.rel (%p180) target = $region28
        $region27: #{tpu_custom_call.1} parent=19 // pred_region
          %s183 = sand.u32 %s16, 1
          %s184 = scalar_lea.sflag [#allocation7], %s183
          %s185 = sand.u32 %s77, 1
          %s186 = smul.addr %s185, 64
          %s187 = scalar_lea.vmem [#allocation8], %s186
          %s188 = sadd.s32 %s16, 1
          %s189 = smul.u32 %s188, 2
          %s190 = smul.u32 2, %s189
          %s192 = ssub.s32 1024, 1024
          %193 = vsyncadd %s184, %s192
          %s194 = smul.addr %s190, 4
          %s195 = smul.addr %s194, 128
          %s196 = scalar_lea.hbm %s2, %s195
          %s197 = sshll.u32 %s187, 4
          %s198 = int_to_ptr.vmem [resolvable:$true] %s197
          %203 = dma.hbm_to_vmem [thread:$0]  %s196, 1024, %s198, %s184, 512, 512, 32
        $region28: #{tpu_custom_call.1} parent=19 // pred_fallthru
          _
      $region20: #{tpu_custom_call.1} parent=5 // pred_fallthru
        _
      %p204 = scmp.le.s32.totalorder 1, %s16
      %p205 = scmp.lt.s32.totalorder %s16, 5
      %p206 = pnand %p204, %p205
      %p207 = pneg %p206
      // Predicated region
      $region29: #{tpu_custom_call.1} parent=5 // pred_check
        _
      $region30: #{tpu_custom_call.1} parent=5 // pred_check_branch
        %209 = sbr.rel (%p206) target = $region32
      $region31: #{tpu_custom_call.1} parent=5 // pred_region
        %s210 = ssub.s32 %s16, 1
        // Predicated region
        $region33: #{tpu_custom_call.1} parent=31 // pred_check
          %p211 = pneg %p37
        $region34: #{tpu_custom_call.1} parent=31 // pred_check_branch
          %213 = sbr.rel (%p211) target = $region36
        $region35: #{tpu_custom_call.1} parent=31 // pred_region
          %214 = dma.done [#allocation4], 704
        $region36: #{tpu_custom_call.1} parent=31 // pred_fallthru
          _
        %s215 = sand.u32 %s21, 1
        %s216 = scalar_lea.sflag [#allocation7], %s215
        %s217 = sand.u32 %s50, 1
        %s218 = smul.addr %s217, 128
        %s219 = scalar_lea.vmem [#allocation6], %s218
        // Predicated region
        $region37: #{tpu_custom_call.1} parent=31 // pred_check
          %p220 = pneg %p63
        $region38: #{tpu_custom_call.1} parent=31 // pred_check_branch
          %222 = sbr.rel (%p220) target = $region40
        $region39: #{tpu_custom_call.1} parent=31 // pred_region
          %223 = dma.done %s216, 2048
        $region40: #{tpu_custom_call.1} parent=31 // pred_fallthru
          _
        %s224 = sand.u32 %s21, 1
        %s225 = scalar_lea.sflag [#allocation7], %s224
        %s226 = sand.u32 %s80, 1
        %s227 = smul.addr %s226, 64
        %s228 = scalar_lea.vmem [#allocation8], %s227
        // Predicated region
        $region41: #{tpu_custom_call.1} parent=31 // pred_check
          %p229 = pneg %p93
        $region42: #{tpu_custom_call.1} parent=31 // pred_check_branch
          %231 = sbr.rel (%p229) target = $region44
        $region43: #{tpu_custom_call.1} parent=31 // pred_region
          %232 = dma.done %s225, 1024
        $region44: #{tpu_custom_call.1} parent=31 // pred_fallthru
          _
        %p233 = pneg %p37
        %p234 = pneg %p34
        %s235 = sand.u32 %s21, 1
        %s236 = scalar_lea.sflag [#allocation7], %s235
        %s237 = sand.u32 %s50, 1
        %s238 = smul.addr %s237, 128
        %s239 = scalar_lea.vmem [#allocation6], %s238
        %p240 = pneg %p63
        %p241 = pneg %p60
        %s242 = sand.u32 %s21, 1
        %s243 = scalar_lea.sflag [#allocation7], %s242
        %s244 = sand.u32 %s80, 1
        %s245 = smul.addr %s244, 64
        %s246 = scalar_lea.vmem [#allocation8], %s245
        %p247 = pneg %p93
        %p248 = pneg %p90
        %p249 = pneg %p119
        %p250 = pneg %p116
        %s251 = sand.u32 %s106, 1
        %s252 = scalar_lea.sflag [#allocation5], %s251
        %s253 = sand.u32 %s106, 1
        %s254 = smul.addr %s253, 128
        %s255 = scalar_lea.vmem [#allocation9], %s254
        %s256 = smul.u32 4, %s21
        %s257 = ssub.s32 18, %s256
        %p258 = scmp.lt.s32.totalorder %s257, 4
        %s259 = scalar_select %p258, %s257, 4
        %s260 = smul.u32 128, %s259
        %s261 = smul.u32 %s260, 4
        %s262 = sadd.s32 %s21, 1
        %s263 = smul.u32 %s262, 2
        %s264 = smul.u32 2, %s263
        %s265 = smul.u32 4, %s21
        %v266 = vld [vmem:[%s219] sm:$0xff]
        %v267 = vld [vmem:[%s219 + $0x8] sm:$0xff]
        %v268 = vld [vmem:[%s219 + $0x10] sm:$0xff]
        %v269 = vld [vmem:[%s219 + $0x18] sm:$0xff]
        %v270 = vld [vmem:[%s219 + $0x20] sm:$0xff]
        %v271 = vld [vmem:[%s219 + $0x28] sm:$0xff]
        %v272 = vld [vmem:[%s219 + $0x30] sm:$0xff]
        %v273 = vld [vmem:[%s219 + $0x38] sm:$0xff]
        %v274 = vld [vmem:[%s219 + $0x40] sm:$0xff]
        %v275 = vld [vmem:[%s219 + $0x48] sm:$0xff]
        %v276 = vld [vmem:[%s219 + $0x50] sm:$0xff]
        %v277 = vld [vmem:[%s219 + $0x58] sm:$0xff]
        %v278 = vld [vmem:[%s219 + $0x60] sm:$0xff]
        %v279 = vld [vmem:[%s219 + $0x68] sm:$0xff]
        %v280 = vld [vmem:[%s219 + $0x70] sm:$0xff]
        %v281 = vld [vmem:[%s219 + $0x78] sm:$0xff]
        %282 = vst [vmem:[#allocation2] sm:$0xff] %v266
        %283 = vst [vmem:[#allocation2 + $0x8] sm:$0xff] %v267
        %284 = vst [vmem:[#allocation2 + $0x10] sm:$0xff] %v268
        %285 = vst [vmem:[#allocation2 + $0x18] sm:$0xff] %v269
        %286 = vst [vmem:[#allocation2 + $0x20] sm:$0xff] %v270
        %287 = vst [vmem:[#allocation2 + $0x28] sm:$0xff] %v271
        %288 = vst [vmem:[#allocation2 + $0x30] sm:$0xff] %v272
        %289 = vst [vmem:[#allocation2 + $0x38] sm:$0xff] %v273
        %290 = vst [vmem:[#allocation2 + $0x40] sm:$0xff] %v274
        %291 = vst [vmem:[#allocation2 + $0x48] sm:$0xff] %v275
        %292 = vst [vmem:[#allocation2 + $0x50] sm:$0xff] %v276
        %293 = vst [vmem:[#allocation2 + $0x58] sm:$0xff] %v277
        %294 = vst [vmem:[#allocation2 + $0x60] sm:$0xff] %v278
        %295 = vst [vmem:[#allocation2 + $0x68] sm:$0xff] %v279
        %296 = vst [vmem:[#allocation2 + $0x70] sm:$0xff] %v280
        %297 = vst [vmem:[#allocation2 + $0x78] sm:$0xff] %v281
        %v298 = vld [vmem:[%s228] sm:$0xff]
        %v299 = vld [vmem:[%s228 + $0x8] sm:$0xff]
        %v300 = vld [vmem:[%s228 + $0x10] sm:$0xff]
        %v301 = vld [vmem:[%s228 + $0x18] sm:$0xff]
        %v302 = vld [vmem:[%s228 + $0x20] sm:$0xff]
        %v303 = vld [vmem:[%s228 + $0x28] sm:$0xff]
        %v304 = vld [vmem:[%s228 + $0x30] sm:$0xff]
        %v305 = vld [vmem:[%s228 + $0x38] sm:$0xff]
        %306 = vst [vmem:[#allocation2 + $0x80] sm:$0xff] %v298
        %307 = vst [vmem:[#allocation2 + $0x88] sm:$0xff] %v299
        %308 = vst [vmem:[#allocation2 + $0x90] sm:$0xff] %v300
        %309 = vst [vmem:[#allocation2 + $0x98] sm:$0xff] %v301
        %310 = vst [vmem:[#allocation2 + $0xa0] sm:$0xff] %v302
        %311 = vst [vmem:[#allocation2 + $0xa8] sm:$0xff] %v303
        %312 = vst [vmem:[#allocation2 + $0xb0] sm:$0xff] %v304
        %313 = vst [vmem:[#allocation2 + $0xb8] sm:$0xff] %v305
        %v314 = vld [vmem:[#allocation2] sm:$0xff]
        %v315 = vld [vmem:[#allocation2 + $0x8] sm:$0xff]
        %v316 = vld [vmem:[#allocation2 + $0x10] sm:$0xff]
        %v317 = vld [vmem:[#allocation2 + $0x18] sm:$0xff]
        %v318 = vld [vmem:[#allocation2 + $0x20] sm:$0xff]
        %v319 = vld [vmem:[#allocation2 + $0x28] sm:$0xff]
        %v320 = vld [vmem:[#allocation2 + $0x30] sm:$0xff]
        %v321 = vld [vmem:[#allocation2 + $0x38] sm:$0xff]
        %v322 = vld [vmem:[#allocation2 + $0x40] sm:$0xff]
        %v323 = vld [vmem:[#allocation2 + $0x48] sm:$0xff]
        %v324 = vld [vmem:[#allocation2 + $0x50] sm:$0xff]
        %v325 = vld [vmem:[#allocation2 + $0x58] sm:$0xff]
        %v326 = vld [vmem:[#allocation2 + $0x60] sm:$0xff]
        %v327 = vld [vmem:[#allocation2 + $0x68] sm:$0xff]
        %v328 = vld [vmem:[#allocation2 + $0x70] sm:$0xff]
        %v329 = vld [vmem:[#allocation2 + $0x78] sm:$0xff]
        %v330 = vld [vmem:[#allocation2 + $0x80] sm:$0xff]
        %v331 = vld [vmem:[#allocation2 + $0x88] sm:$0xff]
        %v332 = vld [vmem:[#allocation2 + $0x90] sm:$0xff]
        %v333 = vld [vmem:[#allocation2 + $0x98] sm:$0xff]
        %v334 = vld [vmem:[#allocation2 + $0xa0] sm:$0xff]
        %v335 = vld [vmem:[#allocation2 + $0xa8] sm:$0xff]
        %v336 = vld [vmem:[#allocation2 + $0xb0] sm:$0xff]
        %v337 = vld [vmem:[#allocation2 + $0xb8] sm:$0xff]
        %v338 = vld [vmem:[%s219] sm:$0xff]
        %v339 = vld [vmem:[%s219 + $0x8] sm:$0xff]
        %v340 = vld [vmem:[%s219 + $0x10] sm:$0xff]
        %v341 = vld [vmem:[%s219 + $0x18] sm:$0xff]
        %v342 = vld [vmem:[%s219 + $0x20] sm:$0xff]
        %v343 = vld [vmem:[%s219 + $0x28] sm:$0xff]
        %v344 = vld [vmem:[%s219 + $0x30] sm:$0xff]
        %v345 = vld [vmem:[%s219 + $0x38] sm:$0xff]
        %v346 = vld [vmem:[%s219 + $0x40] sm:$0xff]
        %v347 = vld [vmem:[%s219 + $0x48] sm:$0xff]
        %v348 = vld [vmem:[%s219 + $0x50] sm:$0xff]
        %v349 = vld [vmem:[%s219 + $0x58] sm:$0xff]
        %v350 = vld [vmem:[%s219 + $0x60] sm:$0xff]
        %v351 = vld [vmem:[%s219 + $0x68] sm:$0xff]
        %v352 = vld [vmem:[%s219 + $0x70] sm:$0xff]
        %v353 = vld [vmem:[%s219 + $0x78] sm:$0xff]
        %v354 = vld [vmem:[#allocation3] sm:$0xf]
        %v356 = vlaneseq
        %v357 = vshrl.u32 %v356, 7
        %v358 = vsub.s32 0, %v357
        %v359 = vrot.slane %v354, %v358
        %v360 = vlaneseq
        %v361 = vshrl.u32 %v360, 7
        %v362 = vsub.s32 1, %v361
        %v363 = vrot.slane %v354, %v362
        %v364 = vlaneseq
        %v365 = vshrl.u32 %v364, 7
        %v366 = vsub.s32 2, %v365
        %v367 = vrot.slane %v354, %v366
        %v368 = vlaneseq
        %v369 = vshrl.u32 %v368, 7
        %v370 = vsub.s32 3, %v369
        %v371 = vrot.slane %v354, %v370
        %v376 = vmul.f32 %v338, %v359
        %v377 = vmul.f32 %v339, %v363
        %v378 = vmul.f32 %v340, %v367
        %v379 = vmul.f32 %v341, %v371
        %v380 = vmul.f32 %v342, %v359
        %v381 = vmul.f32 %v343, %v363
        %v382 = vmul.f32 %v344, %v367
        %v383 = vmul.f32 %v345, %v371
        %v384 = vmul.f32 %v346, %v359
        %v385 = vmul.f32 %v347, %v363
        %v386 = vmul.f32 %v348, %v367
        %v387 = vmul.f32 %v349, %v371
        %v388 = vmul.f32 %v350, %v359
        %v389 = vmul.f32 %v351, %v363
        %v390 = vmul.f32 %v352, %v367
        %v391 = vmul.f32 %v353, %v371
        %v392 = vrot.slane %v314, 1
        %v393 = vrot.slane %v315, 1
        %v394 = vrot.slane %v316, 1
        %v395 = vrot.slane %v317, 1
        %v396 = vrot.slane %v318, 1
        %v397 = vrot.slane %v319, 1
        %v398 = vrot.slane %v320, 1
        %v399 = vrot.slane %v321, 1
        %v400 = vrot.slane %v322, 1
        %v401 = vrot.slane %v323, 1
        %v402 = vrot.slane %v324, 1
        %v403 = vrot.slane %v325, 1
        %v404 = vrot.slane %v326, 1
        %v405 = vrot.slane %v327, 1
        %v406 = vrot.slane %v328, 1
        %v407 = vrot.slane %v329, 1
        %v408 = vrot.slane %v330, 1
        %v409 = vrot.slane %v331, 1
        %v410 = vrot.slane %v332, 1
        %v411 = vrot.slane %v333, 1
        %v412 = vlaneseq
        %v413 = vshrl.u32 %v412, 7
        %vm414 = vcmp.lt.s32.totalorder %v413, 7
        %v415 = vsel %vm414, %v404, %v408
        %v416 = vsel %vm414, %v405, %v409
        %v417 = vsel %vm414, %v406, %v410
        %v418 = vsel %vm414, %v407, %v411
        %v419 = vsel %vm414, %v400, %v404
        %v420 = vsel %vm414, %v401, %v405
        %v421 = vsel %vm414, %v402, %v406
        %v422 = vsel %vm414, %v403, %v407
        %v423 = vsel %vm414, %v396, %v400
        %v424 = vsel %vm414, %v397, %v401
        %v425 = vsel %vm414, %v398, %v402
        %v426 = vsel %vm414, %v399, %v403
        %v427 = vsel %vm414, %v392, %v396
        %v428 = vsel %vm414, %v393, %v397
        %v429 = vsel %vm414, %v394, %v398
        %v430 = vsel %vm414, %v395, %v399
        %s431 = scalar_lea.vmem [#allocation3], 4
        %v432 = vld [vmem:[%s431] sm:$0xf]
        %v434 = vlaneseq
        %v435 = vshrl.u32 %v434, 7
        %v436 = vsub.s32 0, %v435
        %v437 = vrot.slane %v432, %v436
        %v438 = vlaneseq
        %v439 = vshrl.u32 %v438, 7
        %v440 = vsub.s32 1, %v439
        %v441 = vrot.slane %v432, %v440
        %v442 = vlaneseq
        %v443 = vshrl.u32 %v442, 7
        %v444 = vsub.s32 2, %v443
        %v445 = vrot.slane %v432, %v444
        %v446 = vlaneseq
        %v447 = vshrl.u32 %v446, 7
        %v448 = vsub.s32 3, %v447
        %v449 = vrot.slane %v432, %v448
        %v454 = vmul.f32 %v427, %v437
        %v455 = vmul.f32 %v428, %v441
        %v456 = vmul.f32 %v429, %v445
        %v457 = vmul.f32 %v430, %v449
        %v458 = vmul.f32 %v423, %v437
        %v459 = vmul.f32 %v424, %v441
        %v460 = vmul.f32 %v425, %v445
        %v461 = vmul.f32 %v426, %v449
        %v462 = vmul.f32 %v419, %v437
        %v463 = vmul.f32 %v420, %v441
        %v464 = vmul.f32 %v421, %v445
        %v465 = vmul.f32 %v422, %v449
        %v466 = vmul.f32 %v415, %v437
        %v467 = vmul.f32 %v416, %v441
        %v468 = vmul.f32 %v417, %v445
        %v469 = vmul.f32 %v418, %v449
        %v470 = vadd.f32 %v376, %v454
        %v471 = vadd.f32 %v377, %v455
        %v472 = vadd.f32 %v378, %v456
        %v473 = vadd.f32 %v379, %v457
        %v474 = vadd.f32 %v380, %v458
        %v475 = vadd.f32 %v381, %v459
        %v476 = vadd.f32 %v382, %v460
        %v477 = vadd.f32 %v383, %v461
        %v478 = vadd.f32 %v384, %v462
        %v479 = vadd.f32 %v385, %v463
        %v480 = vadd.f32 %v386, %v464
        %v481 = vadd.f32 %v387, %v465
        %v482 = vadd.f32 %v388, %v466
        %v483 = vadd.f32 %v389, %v467
        %v484 = vadd.f32 %v390, %v468
        %v485 = vadd.f32 %v391, %v469
        %v486 = vrot.slane %v314, 2
        %v487 = vrot.slane %v315, 2
        %v488 = vrot.slane %v316, 2
        %v489 = vrot.slane %v317, 2
        %v490 = vrot.slane %v318, 2
        %v491 = vrot.slane %v319, 2
        %v492 = vrot.slane %v320, 2
        %v493 = vrot.slane %v321, 2
        %v494 = vrot.slane %v322, 2
        %v495 = vrot.slane %v323, 2
        %v496 = vrot.slane %v324, 2
        %v497 = vrot.slane %v325, 2
        %v498 = vrot.slane %v326, 2
        %v499 = vrot.slane %v327, 2
        %v500 = vrot.slane %v328, 2
        %v501 = vrot.slane %v329, 2
        %v502 = vrot.slane %v330, 2
        %v503 = vrot.slane %v331, 2
        %v504 = vrot.slane %v332, 2
        %v505 = vrot.slane %v333, 2
        %vm506 = vcmp.lt.s32.totalorder %v413, 6
        %v507 = vsel %vm506, %v498, %v502
        %v508 = vsel %vm506, %v499, %v503
        %v509 = vsel %vm506, %v500, %v504
        %v510 = vsel %vm506, %v501, %v505
        %v511 = vsel %vm506, %v494, %v498
        %v512 = vsel %vm506, %v495, %v499
        %v513 = vsel %vm506, %v496, %v500
        %v514 = vsel %vm506, %v497, %v501
        %v515 = vsel %vm506, %v490, %v494
        %v516 = vsel %vm506, %v491, %v495
        %v517 = vsel %vm506, %v492, %v496
        %v518 = vsel %vm506, %v493, %v497
        %v519 = vsel %vm506, %v486, %v490
        %v520 = vsel %vm506, %v487, %v491
        %v521 = vsel %vm506, %v488, %v492
        %v522 = vsel %vm506, %v489, %v493
        %s523 = scalar_lea.vmem [#allocation3], 8
        %v524 = vld [vmem:[%s523] sm:$0xf]
        %v526 = vlaneseq
        %v527 = vshrl.u32 %v526, 7
        %v528 = vsub.s32 0, %v527
        %v529 = vrot.slane %v524, %v528
        %v530 = vlaneseq
        %v531 = vshrl.u32 %v530, 7
        %v532 = vsub.s32 1, %v531
        %v533 = vrot.slane %v524, %v532
        %v534 = vlaneseq
        %v535 = vshrl.u32 %v534, 7
        %v536 = vsub.s32 2, %v535
        %v537 = vrot.slane %v524, %v536
        %v538 = vlaneseq
        %v539 = vshrl.u32 %v538, 7
        %v540 = vsub.s32 3, %v539
        %v541 = vrot.slane %v524, %v540
        %v546 = vmul.f32 %v519, %v529
        %v547 = vmul.f32 %v520, %v533
        %v548 = vmul.f32 %v521, %v537
        %v549 = vmul.f32 %v522, %v541
        %v550 = vmul.f32 %v515, %v529
        %v551 = vmul.f32 %v516, %v533
        %v552 = vmul.f32 %v517, %v537
        %v553 = vmul.f32 %v518, %v541
        %v554 = vmul.f32 %v511, %v529
        %v555 = vmul.f32 %v512, %v533
        %v556 = vmul.f32 %v513, %v537
        %v557 = vmul.f32 %v514, %v541
        %v558 = vmul.f32 %v507, %v529
        %v559 = vmul.f32 %v508, %v533
        %v560 = vmul.f32 %v509, %v537
        %v561 = vmul.f32 %v510, %v541
        %v562 = vadd.f32 %v470, %v546
        %v563 = vadd.f32 %v471, %v547
        %v564 = vadd.f32 %v472, %v548
        %v565 = vadd.f32 %v473, %v549
        %v566 = vadd.f32 %v474, %v550
        %v567 = vadd.f32 %v475, %v551
        %v568 = vadd.f32 %v476, %v552
        %v569 = vadd.f32 %v477, %v553
        %v570 = vadd.f32 %v478, %v554
        %v571 = vadd.f32 %v479, %v555
        %v572 = vadd.f32 %v480, %v556
        %v573 = vadd.f32 %v481, %v557
        %v574 = vadd.f32 %v482, %v558
        %v575 = vadd.f32 %v483, %v559
        %v576 = vadd.f32 %v484, %v560
        %v577 = vadd.f32 %v485, %v561
        %v578 = vrot.slane %v314, 3
        %v579 = vrot.slane %v315, 3
        %v580 = vrot.slane %v316, 3
        %v581 = vrot.slane %v317, 3
        %v582 = vrot.slane %v318, 3
        %v583 = vrot.slane %v319, 3
        %v584 = vrot.slane %v320, 3
        %v585 = vrot.slane %v321, 3
        %v586 = vrot.slane %v322, 3
        %v587 = vrot.slane %v323, 3
        %v588 = vrot.slane %v324, 3
        %v589 = vrot.slane %v325, 3
        %v590 = vrot.slane %v326, 3
        %v591 = vrot.slane %v327, 3
        %v592 = vrot.slane %v328, 3
        %v593 = vrot.slane %v329, 3
        %v594 = vrot.slane %v330, 3
        %v595 = vrot.slane %v331, 3
        %v596 = vrot.slane %v332, 3
        %v597 = vrot.slane %v333, 3
        %vm598 = vcmp.lt.s32.totalorder %v413, 5
        %v599 = vsel %vm598, %v590, %v594
        %v600 = vsel %vm598, %v591, %v595
        %v601 = vsel %vm598, %v592, %v596
        %v602 = vsel %vm598, %v593, %v597
        %v603 = vsel %vm598, %v586, %v590
        %v604 = vsel %vm598, %v587, %v591
        %v605 = vsel %vm598, %v588, %v592
        %v606 = vsel %vm598, %v589, %v593
        %v607 = vsel %vm598, %v582, %v586
        %v608 = vsel %vm598, %v583, %v587
        %v609 = vsel %vm598, %v584, %v588
        %v610 = vsel %vm598, %v585, %v589
        %v611 = vsel %vm598, %v578, %v582
        %v612 = vsel %vm598, %v579, %v583
        %v613 = vsel %vm598, %v580, %v584
        %v614 = vsel %vm598, %v581, %v585
        %s615 = scalar_lea.vmem [#allocation3], 12
        %v616 = vld [vmem:[%s615] sm:$0xf]
        %v618 = vlaneseq
        %v619 = vshrl.u32 %v618, 7
        %v620 = vsub.s32 0, %v619
        %v621 = vrot.slane %v616, %v620
        %v622 = vlaneseq
        %v623 = vshrl.u32 %v622, 7
        %v624 = vsub.s32 1, %v623
        %v625 = vrot.slane %v616, %v624
        %v626 = vlaneseq
        %v627 = vshrl.u32 %v626, 7
        %v628 = vsub.s32 2, %v627
        %v629 = vrot.slane %v616, %v628
        %v630 = vlaneseq
        %v631 = vshrl.u32 %v630, 7
        %v632 = vsub.s32 3, %v631
        %v633 = vrot.slane %v616, %v632
        %v638 = vmul.f32 %v611, %v621
        %v639 = vmul.f32 %v612, %v625
        %v640 = vmul.f32 %v613, %v629
        %v641 = vmul.f32 %v614, %v633
        %v642 = vmul.f32 %v607, %v621
        %v643 = vmul.f32 %v608, %v625
        %v644 = vmul.f32 %v609, %v629
        %v645 = vmul.f32 %v610, %v633
        %v646 = vmul.f32 %v603, %v621
        %v647 = vmul.f32 %v604, %v625
        %v648 = vmul.f32 %v605, %v629
        %v649 = vmul.f32 %v606, %v633
        %v650 = vmul.f32 %v599, %v621
        %v651 = vmul.f32 %v600, %v625
        %v652 = vmul.f32 %v601, %v629
        %v653 = vmul.f32 %v602, %v633
        %v654 = vadd.f32 %v562, %v638
        %v655 = vadd.f32 %v563, %v639
        %v656 = vadd.f32 %v564, %v640
        %v657 = vadd.f32 %v565, %v641
        %v658 = vadd.f32 %v566, %v642
        %v659 = vadd.f32 %v567, %v643
        %v660 = vadd.f32 %v568, %v644
        %v661 = vadd.f32 %v569, %v645
        %v662 = vadd.f32 %v570, %v646
        %v663 = vadd.f32 %v571, %v647
        %v664 = vadd.f32 %v572, %v648
        %v665 = vadd.f32 %v573, %v649
        %v666 = vadd.f32 %v574, %v650
        %v667 = vadd.f32 %v575, %v651
        %v668 = vadd.f32 %v576, %v652
        %v669 = vadd.f32 %v577, %v653
        %v670 = vrot.slane %v314, 4
        %v671 = vrot.slane %v315, 4
        %v672 = vrot.slane %v316, 4
        %v673 = vrot.slane %v317, 4
        %v674 = vrot.slane %v318, 4
        %v675 = vrot.slane %v319, 4
        %v676 = vrot.slane %v320, 4
        %v677 = vrot.slane %v321, 4
        %v678 = vrot.slane %v322, 4
        %v679 = vrot.slane %v323, 4
        %v680 = vrot.slane %v324, 4
        %v681 = vrot.slane %v325, 4
        %v682 = vrot.slane %v326, 4
        %v683 = vrot.slane %v327, 4
        %v684 = vrot.slane %v328, 4
        %v685 = vrot.slane %v329, 4
        %v686 = vrot.slane %v330, 4
        %v687 = vrot.slane %v331, 4
        %v688 = vrot.slane %v332, 4
        %v689 = vrot.slane %v333, 4
        %vm690 = vcmp.lt.s32.totalorder %v413, 4
        %v691 = vsel %vm690, %v682, %v686
        %v692 = vsel %vm690, %v683, %v687
        %v693 = vsel %vm690, %v684, %v688
        %v694 = vsel %vm690, %v685, %v689
        %v695 = vsel %vm690, %v678, %v682
        %v696 = vsel %vm690, %v679, %v683
        %v697 = vsel %vm690, %v680, %v684
        %v698 = vsel %vm690, %v681, %v685
        %v699 = vsel %vm690, %v674, %v678
        %v700 = vsel %vm690, %v675, %v679
        %v701 = vsel %vm690, %v676, %v680
        %v702 = vsel %vm690, %v677, %v681
        %v703 = vsel %vm690, %v670, %v674
        %v704 = vsel %vm690, %v671, %v675
        %v705 = vsel %vm690, %v672, %v676
        %v706 = vsel %vm690, %v673, %v677
        %s707 = scalar_lea.vmem [#allocation3], 16
        %v708 = vld [vmem:[%s707] sm:$0xf]
        %v710 = vlaneseq
        %v711 = vshrl.u32 %v710, 7
        %v712 = vsub.s32 0, %v711
        %v713 = vrot.slane %v708, %v712
        %v714 = vlaneseq
        %v715 = vshrl.u32 %v714, 7
        %v716 = vsub.s32 1, %v715
        %v717 = vrot.slane %v708, %v716
        %v718 = vlaneseq
        %v719 = vshrl.u32 %v718, 7
        %v720 = vsub.s32 2, %v719
        %v721 = vrot.slane %v708, %v720
        %v722 = vlaneseq
        %v723 = vshrl.u32 %v722, 7
        %v724 = vsub.s32 3, %v723
        %v725 = vrot.slane %v708, %v724
        %v730 = vmul.f32 %v703, %v713
        %v731 = vmul.f32 %v704, %v717
        %v732 = vmul.f32 %v705, %v721
        %v733 = vmul.f32 %v706, %v725
        %v734 = vmul.f32 %v699, %v713
        %v735 = vmul.f32 %v700, %v717
        %v736 = vmul.f32 %v701, %v721
        %v737 = vmul.f32 %v702, %v725
        %v738 = vmul.f32 %v695, %v713
        %v739 = vmul.f32 %v696, %v717
        %v740 = vmul.f32 %v697, %v721
        %v741 = vmul.f32 %v698, %v725
        %v742 = vmul.f32 %v691, %v713
        %v743 = vmul.f32 %v692, %v717
        %v744 = vmul.f32 %v693, %v721
        %v745 = vmul.f32 %v694, %v725
        %v746 = vadd.f32 %v654, %v730
        %v747 = vadd.f32 %v655, %v731
        %v748 = vadd.f32 %v656, %v732
        %v749 = vadd.f32 %v657, %v733
        %v750 = vadd.f32 %v658, %v734
        %v751 = vadd.f32 %v659, %v735
        %v752 = vadd.f32 %v660, %v736
        %v753 = vadd.f32 %v661, %v737
        %v754 = vadd.f32 %v662, %v738
        %v755 = vadd.f32 %v663, %v739
        %v756 = vadd.f32 %v664, %v740
        %v757 = vadd.f32 %v665, %v741
        %v758 = vadd.f32 %v666, %v742
        %v759 = vadd.f32 %v667, %v743
        %v760 = vadd.f32 %v668, %v744
        %v761 = vadd.f32 %v669, %v745
        %v762 = vrot.slane %v314, 5
        %v763 = vrot.slane %v315, 5
        %v764 = vrot.slane %v316, 5
        %v765 = vrot.slane %v317, 5
        %v766 = vrot.slane %v318, 5
        %v767 = vrot.slane %v319, 5
        %v768 = vrot.slane %v320, 5
        %v769 = vrot.slane %v321, 5
        %v770 = vrot.slane %v322, 5
        %v771 = vrot.slane %v323, 5
        %v772 = vrot.slane %v324, 5
        %v773 = vrot.slane %v325, 5
        %v774 = vrot.slane %v326, 5
        %v775 = vrot.slane %v327, 5
        %v776 = vrot.slane %v328, 5
        %v777 = vrot.slane %v329, 5
        %v778 = vrot.slane %v330, 5
        %v779 = vrot.slane %v331, 5
        %v780 = vrot.slane %v332, 5
        %v781 = vrot.slane %v333, 5
        %vm782 = vcmp.lt.s32.totalorder %v413, 3
        %v783 = vsel %vm782, %v774, %v778
        %v784 = vsel %vm782, %v775, %v779
        %v785 = vsel %vm782, %v776, %v780
        %v786 = vsel %vm782, %v777, %v781
        %v787 = vsel %vm782, %v770, %v774
        %v788 = vsel %vm782, %v771, %v775
        %v789 = vsel %vm782, %v772, %v776
        %v790 = vsel %vm782, %v773, %v777
        %v791 = vsel %vm782, %v766, %v770
        %v792 = vsel %vm782, %v767, %v771
        %v793 = vsel %vm782, %v768, %v772
        %v794 = vsel %vm782, %v769, %v773
        %v795 = vsel %vm782, %v762, %v766
        %v796 = vsel %vm782, %v763, %v767
        %v797 = vsel %vm782, %v764, %v768
        %v798 = vsel %vm782, %v765, %v769
        %s799 = scalar_lea.vmem [#allocation3], 20
        %v800 = vld [vmem:[%s799] sm:$0xf]
        %v802 = vlaneseq
        %v803 = vshrl.u32 %v802, 7
        %v804 = vsub.s32 0, %v803
        %v805 = vrot.slane %v800, %v804
        %v806 = vlaneseq
        %v807 = vshrl.u32 %v806, 7
        %v808 = vsub.s32 1, %v807
        %v809 = vrot.slane %v800, %v808
        %v810 = vlaneseq
        %v811 = vshrl.u32 %v810, 7
        %v812 = vsub.s32 2, %v811
        %v813 = vrot.slane %v800, %v812
        %v814 = vlaneseq
        %v815 = vshrl.u32 %v814, 7
        %v816 = vsub.s32 3, %v815
        %v817 = vrot.slane %v800, %v816
        %v822 = vmul.f32 %v795, %v805
        %v823 = vmul.f32 %v796, %v809
        %v824 = vmul.f32 %v797, %v813
        %v825 = vmul.f32 %v798, %v817
        %v826 = vmul.f32 %v791, %v805
        %v827 = vmul.f32 %v792, %v809
        %v828 = vmul.f32 %v793, %v813
        %v829 = vmul.f32 %v794, %v817
        %v830 = vmul.f32 %v787, %v805
        %v831 = vmul.f32 %v788, %v809
        %v832 = vmul.f32 %v789, %v813
        %v833 = vmul.f32 %v790, %v817
        %v834 = vmul.f32 %v783, %v805
        %v835 = vmul.f32 %v784, %v809
        %v836 = vmul.f32 %v785, %v813
        %v837 = vmul.f32 %v786, %v817
        %v838 = vadd.f32 %v746, %v822
        %v839 = vadd.f32 %v747, %v823
        %v840 = vadd.f32 %v748, %v824
        %v841 = vadd.f32 %v749, %v825
        %v842 = vadd.f32 %v750, %v826
        %v843 = vadd.f32 %v751, %v827
        %v844 = vadd.f32 %v752, %v828
        %v845 = vadd.f32 %v753, %v829
        %v846 = vadd.f32 %v754, %v830
        %v847 = vadd.f32 %v755, %v831
        %v848 = vadd.f32 %v756, %v832
        %v849 = vadd.f32 %v757, %v833
        %v850 = vadd.f32 %v758, %v834
        %v851 = vadd.f32 %v759, %v835
        %v852 = vadd.f32 %v760, %v836
        %v853 = vadd.f32 %v761, %v837
        %v854 = vrot.slane %v314, 6
        %v855 = vrot.slane %v315, 6
        %v856 = vrot.slane %v316, 6
        %v857 = vrot.slane %v317, 6
        %v858 = vrot.slane %v318, 6
        %v859 = vrot.slane %v319, 6
        %v860 = vrot.slane %v320, 6
        %v861 = vrot.slane %v321, 6
        %v862 = vrot.slane %v322, 6
        %v863 = vrot.slane %v323, 6
        %v864 = vrot.slane %v324, 6
        %v865 = vrot.slane %v325, 6
        %v866 = vrot.slane %v326, 6
        %v867 = vrot.slane %v327, 6
        %v868 = vrot.slane %v328, 6
        %v869 = vrot.slane %v329, 6
        %v870 = vrot.slane %v330, 6
        %v871 = vrot.slane %v331, 6
        %v872 = vrot.slane %v332, 6
        %v873 = vrot.slane %v333, 6
        %vm874 = vcmp.lt.s32.totalorder %v413, 2
        %v875 = vsel %vm874, %v866, %v870
        %v876 = vsel %vm874, %v867, %v871
        %v877 = vsel %vm874, %v868, %v872
        %v878 = vsel %vm874, %v869, %v873
        %v879 = vsel %vm874, %v862, %v866
        %v880 = vsel %vm874, %v863, %v867
        %v881 = vsel %vm874, %v864, %v868
        %v882 = vsel %vm874, %v865, %v869
        %v883 = vsel %vm874, %v858, %v862
        %v884 = vsel %vm874, %v859, %v863
        %v885 = vsel %vm874, %v860, %v864
        %v886 = vsel %vm874, %v861, %v865
        %v887 = vsel %vm874, %v854, %v858
        %v888 = vsel %vm874, %v855, %v859
        %v889 = vsel %vm874, %v856, %v860
        %v890 = vsel %vm874, %v857, %v861
        %s891 = scalar_lea.vmem [#allocation3], 24
        %v892 = vld [vmem:[%s891] sm:$0xf]
        %v894 = vlaneseq
        %v895 = vshrl.u32 %v894, 7
        %v896 = vsub.s32 0, %v895
        %v897 = vrot.slane %v892, %v896
        %v898 = vlaneseq
        %v899 = vshrl.u32 %v898, 7
        %v900 = vsub.s32 1, %v899
        %v901 = vrot.slane %v892, %v900
        %v902 = vlaneseq
        %v903 = vshrl.u32 %v902, 7
        %v904 = vsub.s32 2, %v903
        %v905 = vrot.slane %v892, %v904
        %v906 = vlaneseq
        %v907 = vshrl.u32 %v906, 7
        %v908 = vsub.s32 3, %v907
        %v909 = vrot.slane %v892, %v908
        %v914 = vmul.f32 %v887, %v897
        %v915 = vmul.f32 %v888, %v901
        %v916 = vmul.f32 %v889, %v905
        %v917 = vmul.f32 %v890, %v909
        %v918 = vmul.f32 %v883, %v897
        %v919 = vmul.f32 %v884, %v901
        %v920 = vmul.f32 %v885, %v905
        %v921 = vmul.f32 %v886, %v909
        %v922 = vmul.f32 %v879, %v897
        %v923 = vmul.f32 %v880, %v901
        %v924 = vmul.f32 %v881, %v905
        %v925 = vmul.f32 %v882, %v909
        %v926 = vmul.f32 %v875, %v897
        %v927 = vmul.f32 %v876, %v901
        %v928 = vmul.f32 %v877, %v905
        %v929 = vmul.f32 %v878, %v909
        %v930 = vadd.f32 %v838, %v914
        %v931 = vadd.f32 %v839, %v915
        %v932 = vadd.f32 %v840, %v916
        %v933 = vadd.f32 %v841, %v917
        %v934 = vadd.f32 %v842, %v918
        %v935 = vadd.f32 %v843, %v919
        %v936 = vadd.f32 %v844, %v920
        %v937 = vadd.f32 %v845, %v921
        %v938 = vadd.f32 %v846, %v922
        %v939 = vadd.f32 %v847, %v923
        %v940 = vadd.f32 %v848, %v924
        %v941 = vadd.f32 %v849, %v925
        %v942 = vadd.f32 %v850, %v926
        %v943 = vadd.f32 %v851, %v927
        %v944 = vadd.f32 %v852, %v928
        %v945 = vadd.f32 %v853, %v929
        %v946 = vrot.slane %v314, 7
        %v947 = vrot.slane %v315, 7
        %v948 = vrot.slane %v316, 7
        %v949 = vrot.slane %v317, 7
        %v950 = vrot.slane %v318, 7
        %v951 = vrot.slane %v319, 7
        %v952 = vrot.slane %v320, 7
        %v953 = vrot.slane %v321, 7
        %v954 = vrot.slane %v322, 7
        %v955 = vrot.slane %v323, 7
        %v956 = vrot.slane %v324, 7
        %v957 = vrot.slane %v325, 7
        %v958 = vrot.slane %v326, 7
        %v959 = vrot.slane %v327, 7
        %v960 = vrot.slane %v328, 7
        %v961 = vrot.slane %v329, 7
        %v962 = vrot.slane %v330, 7
        %v963 = vrot.slane %v331, 7
        %v964 = vrot.slane %v332, 7
        %v965 = vrot.slane %v333, 7
        %vm966 = vcmp.lt.s32.totalorder %v413, 1
        %v967 = vsel %vm966, %v958, %v962
        %v968 = vsel %vm966, %v959, %v963
        %v969 = vsel %vm966, %v960, %v964
        %v970 = vsel %vm966, %v961, %v965
        %v971 = vsel %vm966, %v954, %v958
        %v972 = vsel %vm966, %v955, %v959
        %v973 = vsel %vm966, %v956, %v960
        %v974 = vsel %vm966, %v957, %v961
        %v975 = vsel %vm966, %v950, %v954
        %v976 = vsel %vm966, %v951, %v955
        %v977 = vsel %vm966, %v952, %v956
        %v978 = vsel %vm966, %v953, %v957
        %v979 = vsel %vm966, %v946, %v950
        %v980 = vsel %vm966, %v947, %v951
        %v981 = vsel %vm966, %v948, %v952
        %v982 = vsel %vm966, %v949, %v953
        %s983 = scalar_lea.vmem [#allocation3], 28
        %v984 = vld [vmem:[%s983] sm:$0xf]
        %v986 = vlaneseq
        %v987 = vshrl.u32 %v986, 7
        %v988 = vsub.s32 0, %v987
        %v989 = vrot.slane %v984, %v988
        %v990 = vlaneseq
        %v991 = vshrl.u32 %v990, 7
        %v992 = vsub.s32 1, %v991
        %v993 = vrot.slane %v984, %v992
        %v994 = vlaneseq
        %v995 = vshrl.u32 %v994, 7
        %v996 = vsub.s32 2, %v995
        %v997 = vrot.slane %v984, %v996
        %v998 = vlaneseq
        %v999 = vshrl.u32 %v998, 7
        %v1000 = vsub.s32 3, %v999
        %v1001 = vrot.slane %v984, %v1000
        %v1006 = vmul.f32 %v979, %v989
        %v1007 = vmul.f32 %v980, %v993
        %v1008 = vmul.f32 %v981, %v997
        %v1009 = vmul.f32 %v982, %v1001
        %v1010 = vmul.f32 %v975, %v989
        %v1011 = vmul.f32 %v976, %v993
        %v1012 = vmul.f32 %v977, %v997
        %v1013 = vmul.f32 %v978, %v1001
        %v1014 = vmul.f32 %v971, %v989
        %v1015 = vmul.f32 %v972, %v993
        %v1016 = vmul.f32 %v973, %v997
        %v1017 = vmul.f32 %v974, %v1001
        %v1018 = vmul.f32 %v967, %v989
        %v1019 = vmul.f32 %v968, %v993
        %v1020 = vmul.f32 %v969, %v997
        %v1021 = vmul.f32 %v970, %v1001
        %v1022 = vadd.f32 %v930, %v1006
        %v1023 = vadd.f32 %v931, %v1007
        %v1024 = vadd.f32 %v932, %v1008
        %v1025 = vadd.f32 %v933, %v1009
        %v1026 = vadd.f32 %v934, %v1010
        %v1027 = vadd.f32 %v935, %v1011
        %v1028 = vadd.f32 %v936, %v1012
        %v1029 = vadd.f32 %v937, %v1013
        %v1030 = vadd.f32 %v938, %v1014
        %v1031 = vadd.f32 %v939, %v1015
        %v1032 = vadd.f32 %v940, %v1016
        %v1033 = vadd.f32 %v941, %v1017
        %v1034 = vadd.f32 %v942, %v1018
        %v1035 = vadd.f32 %v943, %v1019
        %v1036 = vadd.f32 %v944, %v1020
        %v1037 = vadd.f32 %v945, %v1021
        %s1038 = scalar_lea.vmem [#allocation3], 32
        %v1039 = vld [vmem:[%s1038] sm:$0xf]
        %v1041 = vlaneseq
        %v1042 = vshrl.u32 %v1041, 7
        %v1043 = vsub.s32 0, %v1042
        %v1044 = vrot.slane %v1039, %v1043
        %v1045 = vlaneseq
        %v1046 = vshrl.u32 %v1045, 7
        %v1047 = vsub.s32 1, %v1046
        %v1048 = vrot.slane %v1039, %v1047
        %v1049 = vlaneseq
        %v1050 = vshrl.u32 %v1049, 7
        %v1051 = vsub.s32 2, %v1050
        %v1052 = vrot.slane %v1039, %v1051
        %v1053 = vlaneseq
        %v1054 = vshrl.u32 %v1053, 7
        %v1055 = vsub.s32 3, %v1054
        %v1056 = vrot.slane %v1039, %v1055
        %v1061 = vmul.f32 %v318, %v1044
        %v1062 = vmul.f32 %v319, %v1048
        %v1063 = vmul.f32 %v320, %v1052
        %v1064 = vmul.f32 %v321, %v1056
        %v1065 = vmul.f32 %v322, %v1044
        %v1066 = vmul.f32 %v323, %v1048
        %v1067 = vmul.f32 %v324, %v1052
        %v1068 = vmul.f32 %v325, %v1056
        %v1069 = vmul.f32 %v326, %v1044
        %v1070 = vmul.f32 %v327, %v1048
        %v1071 = vmul.f32 %v328, %v1052
        %v1072 = vmul.f32 %v329, %v1056
        %v1073 = vmul.f32 %v330, %v1044
        %v1074 = vmul.f32 %v331, %v1048
        %v1075 = vmul.f32 %v332, %v1052
        %v1076 = vmul.f32 %v333, %v1056
        %v1077 = vadd.f32 %v1022, %v1061
        %v1078 = vadd.f32 %v1023, %v1062
        %v1079 = vadd.f32 %v1024, %v1063
        %v1080 = vadd.f32 %v1025, %v1064
        %v1081 = vadd.f32 %v1026, %v1065
        %v1082 = vadd.f32 %v1027, %v1066
        %v1083 = vadd.f32 %v1028, %v1067
        %v1084 = vadd.f32 %v1029, %v1068
        %v1085 = vadd.f32 %v1030, %v1069
        %v1086 = vadd.f32 %v1031, %v1070
        %v1087 = vadd.f32 %v1032, %v1071
        %v1088 = vadd.f32 %v1033, %v1072
        %v1089 = vadd.f32 %v1034, %v1073
        %v1090 = vadd.f32 %v1035, %v1074
        %v1091 = vadd.f32 %v1036, %v1075
        %v1092 = vadd.f32 %v1037, %v1076
        %v1093 = vrot.slane %v334, 1
        %v1094 = vrot.slane %v335, 1
        %v1095 = vrot.slane %v336, 1
        %v1096 = vrot.slane %v337, 1
        %v1097 = vsel %vm414, %v408, %v1093
        %v1098 = vsel %vm414, %v409, %v1094
        %v1099 = vsel %vm414, %v410, %v1095
        %v1100 = vsel %vm414, %v411, %v1096
        %s1101 = scalar_lea.vmem [#allocation3], 36
        %v1102 = vld [vmem:[%s1101] sm:$0xf]
        %v1104 = vlaneseq
        %v1105 = vshrl.u32 %v1104, 7
        %v1106 = vsub.s32 0, %v1105
        %v1107 = vrot.slane %v1102, %v1106
        %v1108 = vlaneseq
        %v1109 = vshrl.u32 %v1108, 7
        %v1110 = vsub.s32 1, %v1109
        %v1111 = vrot.slane %v1102, %v1110
        %v1112 = vlaneseq
        %v1113 = vshrl.u32 %v1112, 7
        %v1114 = vsub.s32 2, %v1113
        %v1115 = vrot.slane %v1102, %v1114
        %v1116 = vlaneseq
        %v1117 = vshrl.u32 %v1116, 7
        %v1118 = vsub.s32 3, %v1117
        %v1119 = vrot.slane %v1102, %v1118
        %v1124 = vmul.f32 %v423, %v1107
        %v1125 = vmul.f32 %v424, %v1111
        %v1126 = vmul.f32 %v425, %v1115
        %v1127 = vmul.f32 %v426, %v1119
        %v1128 = vmul.f32 %v419, %v1107
        %v1129 = vmul.f32 %v420, %v1111
        %v1130 = vmul.f32 %v421, %v1115
        %v1131 = vmul.f32 %v422, %v1119
        %v1132 = vmul.f32 %v415, %v1107
        %v1133 = vmul.f32 %v416, %v1111
        %v1134 = vmul.f32 %v417, %v1115
        %v1135 = vmul.f32 %v418, %v1119
        %v1136 = vmul.f32 %v1097, %v1107
        %v1137 = vmul.f32 %v1098, %v1111
        %v1138 = vmul.f32 %v1099, %v1115
        %v1139 = vmul.f32 %v1100, %v1119
        %v1140 = vadd.f32 %v1077, %v1124
        %v1141 = vadd.f32 %v1078, %v1125
        %v1142 = vadd.f32 %v1079, %v1126
        %v1143 = vadd.f32 %v1080, %v1127
        %v1144 = vadd.f32 %v1081, %v1128
        %v1145 = vadd.f32 %v1082, %v1129
        %v1146 = vadd.f32 %v1083, %v1130
        %v1147 = vadd.f32 %v1084, %v1131
        %v1148 = vadd.f32 %v1085, %v1132
        %v1149 = vadd.f32 %v1086, %v1133
        %v1150 = vadd.f32 %v1087, %v1134
        %v1151 = vadd.f32 %v1088, %v1135
        %v1152 = vadd.f32 %v1089, %v1136
        %v1153 = vadd.f32 %v1090, %v1137
        %v1154 = vadd.f32 %v1091, %v1138
        %v1155 = vadd.f32 %v1092, %v1139
        %v1156 = vrot.slane %v334, 2
        %v1157 = vrot.slane %v335, 2
        %v1158 = vrot.slane %v336, 2
        %v1159 = vrot.slane %v337, 2
        %v1160 = vsel %vm506, %v502, %v1156
        %v1161 = vsel %vm506, %v503, %v1157
        %v1162 = vsel %vm506, %v504, %v1158
        %v1163 = vsel %vm506, %v505, %v1159
        %s1164 = scalar_lea.vmem [#allocation3], 40
        %v1165 = vld [vmem:[%s1164] sm:$0xf]
        %v1167 = vlaneseq
        %v1168 = vshrl.u32 %v1167, 7
        %v1169 = vsub.s32 0, %v1168
        %v1170 = vrot.slane %v1165, %v1169
        %v1171 = vlaneseq
        %v1172 = vshrl.u32 %v1171, 7
        %v1173 = vsub.s32 1, %v1172
        %v1174 = vrot.slane %v1165, %v1173
        %v1175 = vlaneseq
        %v1176 = vshrl.u32 %v1175, 7
        %v1177 = vsub.s32 2, %v1176
        %v1178 = vrot.slane %v1165, %v1177
        %v1179 = vlaneseq
        %v1180 = vshrl.u32 %v1179, 7
        %v1181 = vsub.s32 3, %v1180
        %v1182 = vrot.slane %v1165, %v1181
        %v1187 = vmul.f32 %v515, %v1170
        %v1188 = vmul.f32 %v516, %v1174
        %v1189 = vmul.f32 %v517, %v1178
        %v1190 = vmul.f32 %v518, %v1182
        %v1191 = vmul.f32 %v511, %v1170
        %v1192 = vmul.f32 %v512, %v1174
        %v1193 = vmul.f32 %v513, %v1178
        %v1194 = vmul.f32 %v514, %v1182
        %v1195 = vmul.f32 %v507, %v1170
        %v1196 = vmul.f32 %v508, %v1174
        %v1197 = vmul.f32 %v509, %v1178
        %v1198 = vmul.f32 %v510, %v1182
        %v1199 = vmul.f32 %v1160, %v1170
        %v1200 = vmul.f32 %v1161, %v1174
        %v1201 = vmul.f32 %v1162, %v1178
        %v1202 = vmul.f32 %v1163, %v1182
        %v1203 = vadd.f32 %v1140, %v1187
        %v1204 = vadd.f32 %v1141, %v1188
        %v1205 = vadd.f32 %v1142, %v1189
        %v1206 = vadd.f32 %v1143, %v1190
        %v1207 = vadd.f32 %v1144, %v1191
        %v1208 = vadd.f32 %v1145, %v1192
        %v1209 = vadd.f32 %v1146, %v1193
        %v1210 = vadd.f32 %v1147, %v1194
        %v1211 = vadd.f32 %v1148, %v1195
        %v1212 = vadd.f32 %v1149, %v1196
        %v1213 = vadd.f32 %v1150, %v1197
        %v1214 = vadd.f32 %v1151, %v1198
        %v1215 = vadd.f32 %v1152, %v1199
        %v1216 = vadd.f32 %v1153, %v1200
        %v1217 = vadd.f32 %v1154, %v1201
        %v1218 = vadd.f32 %v1155, %v1202
        %1219 = vst [vmem:[%s255] sm:$0xff] %v1203
        %1220 = vst [vmem:[%s255 + $0x8] sm:$0xff] %v1204
        %1221 = vst [vmem:[%s255 + $0x10] sm:$0xff] %v1205
        %1222 = vst [vmem:[%s255 + $0x18] sm:$0xff] %v1206
        %1223 = vst [vmem:[%s255 + $0x20] sm:$0xff] %v1207
        %1224 = vst [vmem:[%s255 + $0x28] sm:$0xff] %v1208
        %1225 = vst [vmem:[%s255 + $0x30] sm:$0xff] %v1209
        %1226 = vst [vmem:[%s255 + $0x38] sm:$0xff] %v1210
        %1227 = vst [vmem:[%s255 + $0x40] sm:$0xff] %v1211
        %1228 = vst [vmem:[%s255 + $0x48] sm:$0xff] %v1212
        %1229 = vst [vmem:[%s255 + $0x50] sm:$0xff] %v1213
        %1230 = vst [vmem:[%s255 + $0x58] sm:$0xff] %v1214
        %1231 = vst [vmem:[%s255 + $0x60] sm:$0xff] %v1215
        %1232 = vst [vmem:[%s255 + $0x68] sm:$0xff] %v1216
        %1233 = vst [vmem:[%s255 + $0x70] sm:$0xff] %v1217
        %1234 = vst [vmem:[%s255 + $0x78] sm:$0xff] %v1218
        %s1235 = sand.u32 %s106, 1
        %s1236 = scalar_lea.sflag [#allocation5], %s1235
        %s1237 = sand.u32 %s106, 1
        %s1238 = smul.addr %s1237, 128
        %s1239 = scalar_lea.vmem [#allocation9], %s1238
        // Predicated region
        $region45: #{tpu_custom_call.1} parent=31 // pred_check
          %p1240 = pneg %p116
        $region46: #{tpu_custom_call.1} parent=31 // pred_check_branch
          %1242 = sbr.rel (%p1240) target = $region48
        $region47: #{tpu_custom_call.1} parent=31 // pred_region
          %s1243 = smul.u32 4, %s21
          %s1245 = ssub.s32 2048, 2048
          %1246 = vsyncadd %s1236, %s1245
          %s1247 = smul.addr %s1243, 4
          %s1248 = smul.addr %s1247, 128
          %s1249 = scalar_lea.hbm %s3, %s1248
          %s1250 = sshll.u32 %s1239, 4
          %s1251 = int_to_ptr.vmem [resolvable:$true] %s1250
          %1256 = dma.vmem_to_hbm [thread:$0]  %s1251, 2048, %s1249, %s1236, 512, 512, 32
        $region48: #{tpu_custom_call.1} parent=31 // pred_fallthru
          _
      $region32: #{tpu_custom_call.1} parent=5 // pred_fallthru
        _
      %p1257 = scmp.le.s32.totalorder 2, %s16
      // Predicated region
      $region49: #{tpu_custom_call.1} parent=5 // pred_check
        %p1258 = pneg %p1257
      $region50: #{tpu_custom_call.1} parent=5 // pred_check_branch
        %1260 = sbr.rel (%p1258) target = $region52
      $region51: #{tpu_custom_call.1} parent=5 // pred_region
        %s1261 = ssub.s32 %s16, 2
        // Predicated region
        $region53: #{tpu_custom_call.1} parent=51 // pred_check
          %p1262 = pneg %p122
        $region54: #{tpu_custom_call.1} parent=51 // pred_check_branch
          %1264 = sbr.rel (%p1262) target = $region56
        $region55: #{tpu_custom_call.1} parent=51 // pred_region
          %s1265 = sand.u32 %s107, 1
          %s1266 = scalar_lea.sflag [#allocation5], %s1265
          %s1267 = sand.u32 %s107, 1
          %s1268 = smul.addr %s1267, 128
          %s1269 = scalar_lea.vmem [#allocation9], %s1268
          %1270 = dma.done %s1266, 2048
        $region56: #{tpu_custom_call.1} parent=51 // pred_fallthru
          _
      $region52: #{tpu_custom_call.1} parent=5 // pred_fallthru
        _
    $region6: #{tpu_custom_call.1} parent=1 // loop_footer
      %s20 = sadd.s32 1, %s16
    $region7: #{tpu_custom_call.1} parent=1 // loop_footer_branch
      %15 = sbr.rel target = $region3
    $region8: #{tpu_custom_call.1} parent=1 // loop_exit
      _
    %1271 = vsyncpa [#allocation4], 1
    %s1272 = scalar_lea.sflag [#allocation4], 1
    %1273 = vsyncpa %s1272, 1
    %1274 = vsyncpa [#allocation7], 1
    %s1275 = scalar_lea.sflag [#allocation7], 1
    %1276 = vsyncpa %s1275, 1
    %1277 = vsyncpa [#allocation5], 1
    %s1278 = scalar_lea.sflag [#allocation5], 1
    %1279 = vsyncpa %s1278, 1

</llo_original>
